<compile_context>
chip_gen: v7x
topology: tpu7x:2x2x1
jax: 0.10.0
libtpu: 0.0.40
codegen_flags: <defaults>
</compile_context>

<pallas_src>
import functools

import jax
import jax.numpy as jnp
from jax.experimental import pallas as pl
from jax.experimental.pallas import tpu as pltpu


def _round_up(x, m):
    return (x + m - 1) // m * m


def _pick_ff_tile(d_ff_pad, target):
    """Largest multiple of 128 that divides d_ff_pad and is <= target."""
    tf = min(_round_up(target, 128), d_ff_pad)
    tf = (tf // 128) * 128
    while d_ff_pad % tf != 0:
        tf -= 128
    return tf


# --------------------------------------------------------------------------
# Weight preparation (done ONCE at parameter-init time, not per forward call)
# --------------------------------------------------------------------------
def fuse_reglu_weights(w1, wv, w2, *, block_ff=None, mxu_dtype=None,
                       vmem_weight_budget=24 * 1024 * 1024):
    """Pre-fuse W1|Wv per d_ff tile, pad d_ff to a multiple of 128, and cast
    the weights to the MXU compute dtype.

    Returns (w12, w2p):
      w12 : (nk, d_model, 2*tf)   fused [W1 tile | Wv tile] blocks
      w2p : (nk*tf, d_model)      (zero-padded along d_ff if needed)
    """
    d_model, d_ff = w1.shape
    dt = jnp.dtype(mxu_dtype) if mxu_dtype is not None else jnp.dtype(w1.dtype)

    # Pad d_ff to a lane-tile multiple so the gate/value split h[:, :tf]/h[:, tf:]
    # and the w2 tiles stay lane-dense (padded columns contribute exactly 0).
    d_ff_pad = _round_up(d_ff, 128)
    if d_ff_pad != d_ff:
        pad = d_ff_pad - d_ff
        w1 = jnp.pad(w1, ((0, 0), (0, pad)))
        wv = jnp.pad(wv, ((0, 0), (0, pad)))
        w2 = jnp.pad(w2, ((0, pad), (0, 0)))

    if block_ff is None:
        # Weight residency whenever the whole fused weight set fits comfortably
        # in VMEM (it does for tabular-size FFNs); otherwise stream in tiles.
        wbytes = 3 * d_model * d_ff_pad * dt.itemsize
        block_ff = d_ff_pad if wbytes <= vmem_weight_budget else 512

    tf = _pick_ff_tile(d_ff_pad, block_ff)
    nk = d_ff_pad // tf

    w12 = jnp.concatenate(
        [w1.reshape(d_model, nk, tf), wv.reshape(d_model, nk, tf)], axis=2
    ).transpose(1, 0, 2)                                   # (nk, d_model, 2*tf)

    return w12.astype(dt), w2.astype(dt)


# --------------------------------------------------------------------------
# Kernels
# --------------------------------------------------------------------------
def _residual_reglu_resident_kernel(x_ref, w12_ref, w2_ref, o_ref, *, tf):
    # Weights are VMEM-resident (constant block index); one deep contraction
    # per row tile, residual added directly, no accumulator scaffolding.
    x = x_ref[...]
    xm = x.astype(w12_ref.dtype)
    h = jnp.dot(xm, w12_ref[...], preferred_element_type=jnp.float32)  # (tm, 2*tf)
    gated = jnp.maximum(h[:, :tf], 0.0) * h[:, tf:]                     # ReGLU
    y = jnp.dot(gated.astype(w2_ref.dtype), w2_ref[...],
                preferred_element_type=jnp.float32)
    o_ref[...] = (y + x.astype(jnp.float32)).astype(o_ref.dtype)


def _residual_reglu_stream_kernel(x_ref, w12_ref, w2_ref, o_ref, acc_ref, *, tf):
    # Fallback when d_ff is too large for residency: stream weight tiles along
    # the (innermost, "arbitrary") k axis with an f32 accumulator.
    k = pl.program_id(1)

    @pl.when(k == 0)
    def _():
        # Seed the accumulator with the residual input: out = fn(x) + x.
        acc_ref[...] = x_ref[...].astype(jnp.float32)

    xm = x_ref[...].astype(w12_ref.dtype)
    h = jnp.dot(xm, w12_ref[...], preferred_element_type=jnp.float32)
    gated = jnp.maximum(h[:, :tf], 0.0) * h[:, tf:]
    acc_ref[...] += jnp.dot(gated.astype(w2_ref.dtype), w2_ref[...],
                            preferred_element_type=jnp.float32)

    @pl.when(k == pl.num_programs(1) - 1)
    def _():
        o_ref[...] = acc_ref[...].astype(o_ref.dtype)


# --------------------------------------------------------------------------
# Forward
# --------------------------------------------------------------------------
@functools.partial(jax.jit, static_argnames=("block_rows",))
def residual_reglu_forward(x, w12, w2, *, block_rows=None):
    """out = (relu(x @ W1) * (x @ Wv)) @ W2 + x, with pre-fused weights w12/w2."""
    d_model = x.shape[-1]
    nk, dm2, two_tf = w12.shape
    assert dm2 == d_model, "w12 d_model mismatch"
    tf = two_tf // 2
    d_ff_pad = nk * tf
    itemsize = jnp.dtype(x.dtype).itemsize
    w_itemsize = jnp.dtype(w12.dtype).itemsize

    orig_shape = x.shape
    x2d = x.reshape(-1, d_model)
    n_rows = x2d.shape[0]

    # ---- row tile ---------------------------------------------------------
    # Sublane-aligned: 8 for f32, 16 for packed sub-32-bit dtypes. Resident
    # weights need only a modest tile; streaming uses a bigger one so the
    # per-step weight DMA is amortized over more rows.
    row_align = 8 if itemsize >= 4 else 16
    if block_rows is None:
        block_rows = 512 if nk == 1 else 1024
    tm = min(_round_up(block_rows, row_align), _round_up(n_rows, row_align))
    grid_rows = pl.cdiv(n_rows, tm)   # no x padding: ragged last tile is masked

    # ---- compiler params ---------------------------------------------------
    try:
        phys_vmem = int(pltpu.get_tpu_info().vmem_capacity_bytes)
    except Exception:
        phys_vmem = 64 * 1024 * 1024            # conservative (v7x per-TC)
    weight_tile_bytes = (d_model * 2 * tf + tf * d_model) * w_itemsize
    wbufs = 2 if nk == 1 else 3                  # resident (double-buf) / Buffered(3)
    live = (2 * 2 * tm * d_model * itemsize      # x + out tiles, double buffered
            + wbufs * weight_tile_bytes
            + tm * d_model * 4                   # f32 accumulator (stream path)
            + 3 * tm * 2 * tf * 4)               # f32 h / gated headroom
    vmem_limit = int(min(max(2 * live, 32 * 1024 * 1024), (phys_vmem * 3) // 4))

    cost = pl.CostEstimate(
        flops=int(6 * n_rows * d_model * d_ff_pad),
        transcendentals=0,
        bytes_accessed=int(2 * n_rows * d_model * itemsize
                           + (1 if nk == 1 else grid_rows)
                           * 3 * d_model * d_ff_pad * w_itemsize),
    )

    if nk == 1:
        # ---- weight-resident path: weights DMA'd exactly once -------------
        out2d = pl.pallas_call(
            functools.partial(_residual_reglu_resident_kernel, tf=tf),
            out_shape=jax.ShapeDtypeStruct((n_rows, d_model), x.dtype),
            grid_spec=pltpu.PrefetchScalarGridSpec(
                num_scalar_prefetch=0,
                grid=(grid_rows,),
                in_specs=[
                    pl.BlockSpec((tm, d_model), lambda i: (i, 0)),
                    pl.BlockSpec((None, d_model, 2 * tf), lambda i: (0, 0, 0)),
                    pl.BlockSpec((tf, d_model), lambda i: (0, 0)),
                ],
                out_specs=pl.BlockSpec((tm, d_model), lambda i: (i, 0)),
            ),
            compiler_params=pltpu.CompilerParams(
                dimension_semantics=("parallel",),
                vmem_limit_bytes=vmem_limit,
            ),
            cost_estimate=cost,
        )(x2d, w12, w2)
    else:
        # ---- streaming path: weight tiles pipelined along k ---------------
        out2d = pl.pallas_call(
            functools.partial(_residual_reglu_stream_kernel, tf=tf),
            out_shape=jax.ShapeDtypeStruct((n_rows, d_model), x.dtype),
            grid_spec=pltpu.PrefetchScalarGridSpec(
                num_scalar_prefetch=0,
                grid=(grid_rows, nk),
                in_specs=[
                    pl.BlockSpec((tm, d_model), lambda i, k: (i, 0)),
                    pl.BlockSpec((None, d_model, 2 * tf), lambda i, k: (k, 0, 0),
                                 pipeline_mode=pl.Buffered(3)),
                    pl.BlockSpec((tf, d_model), lambda i, k: (k, 0),
                                 pipeline_mode=pl.Buffered(3)),
                ],
                out_specs=pl.BlockSpec((tm, d_model), lambda i, k: (i, 0)),
                scratch_shapes=[pltpu.VMEM((tm, d_model), jnp.float32)],
            ),
            compiler_params=pltpu.CompilerParams(
                dimension_semantics=("parallel", "arbitrary"),
                vmem_limit_bytes=vmem_limit,
            ),
            cost_estimate=cost,
        )(x2d, w12, w2)

    return out2d.reshape(orig_shape)


def residual_reglu_reference(x, w1, wv, w2):
    return (jnp.maximum(x @ w1, 0.0) * (x @ wv)) @ w2 + x


if __name__ == "__main__":
    # Small, lane-dense demo shapes: batch=2, seq=8, d_model=128, d_ff=256.
    batch, seq, d_model, d_ff = 2, 8, 128, 256

    key = jax.random.PRNGKey(0)
    kx, k1, kv, k2 = jax.random.split(key, 4)

    x = jax.random.normal(kx, (batch, seq, d_model), dtype=jnp.float32)
    w1 = jax.random.normal(k1, (d_model, d_ff), dtype=jnp.float32) * (1.0 / d_model) ** 0.5
    wv = jax.random.normal(kv, (d_model, d_ff), dtype=jnp.float32) * (1.0 / d_model) ** 0.5
    w2 = jax.random.normal(k2, (d_ff, d_model), dtype=jnp.float32) * (1.0 / d_ff) ** 0.5

    ref = residual_reglu_reference(x, w1, wv, w2)

    # 1) f32 MXU operands (exact check). Weights fused once, outside the jit path.
    w12_f32, w2_f32 = fuse_reglu_weights(w1, wv, w2)
    out = residual_reglu_forward(x, w12_f32, w2_f32)
    jax.block_until_ready(out)
    assert out.shape == (batch, seq, d_model)
    assert jnp.allclose(out, ref, atol=1e-4, rtol=1e-4), "f32 path mismatch vs reference"

    # 2) bf16 MXU operands (v6e/v7x fast path): weights stored bf16, x cast in-kernel,
    #    f32 accumulation and residual add.
    w12_bf16, w2_bf16 = fuse_reglu_weights(w1, wv, w2, mxu_dtype=jnp.bfloat16)
    out_bf16 = residual_reglu_forward(x, w12_bf16, w2_bf16)
    jax.block_until_ready(out_bf16)
    assert out_bf16.shape == (batch, seq, d_model)
    assert jnp.allclose(out_bf16, ref, atol=1e-1, rtol=5e-2), "bf16 path mismatch vs reference"

    print("KERNEL_OK")
</pallas_src>

<mosaic_0001>
module attributes {stable_mosaic.version = 11 : i64} {
  func.func @_residual_reglu_resident_kernel(%arg0: i32, %arg1: memref<16x128xf32, #tpu.memory_space<vmem>>, %arg2: memref<1x128x512xf32, #tpu.memory_space<vmem>>, %arg3: memref<256x128xf32, #tpu.memory_space<vmem>>, %arg4: memref<16x128xf32, #tpu.memory_space<vmem>>) attributes {dimension_semantics = [#tpu.dimension_semantics<parallel>], iteration_bounds = array<i64: 1>, scalar_prefetch = 0 : i64, scratch_operands = 0 : i64, tpu.core_type = #tpu.core_type<tc>, window_params = [{transform_indices = @transform_0, window_bounds = array<i64: 16, 128>}, {pipeline_mode = #tpu.pipeline_mode<synchronous>, transform_indices = @transform_1, window_bounds = array<i64: 1, 128, 512>}, {pipeline_mode = #tpu.pipeline_mode<synchronous>, transform_indices = @transform_2, window_bounds = array<i64: 256, 128>}, {transform_indices = @transform_3, window_bounds = array<i64: 16, 128>}]} {
    %c0 = arith.constant 0 : index
    %c0_0 = arith.constant 0 : index
    %0 = vector.load %arg1[%c0, %c0_0] : memref<16x128xf32, #tpu.memory_space<vmem>>, vector<16x128xf32>
    %c0_1 = arith.constant 0 : index
    %c0_2 = arith.constant 0 : index
    %c0_3 = arith.constant 0 : index
    %1 = vector.load %arg2[%c0_1, %c0_2, %c0_3] : memref<1x128x512xf32, #tpu.memory_space<vmem>>, vector<1x128x512xf32>
    %2 = vector.shape_cast %1 : vector<1x128x512xf32> to vector<128x512xf32>
    %cst = arith.constant dense<0.000000e+00> : vector<16x512xf32>
    %3 = tpu.matmul %0, %2, %cst {dimension_numbers = #tpu.dot_dimension_numbers<[1], [0], [0], [1], [0, 0, 1, 1], [], []>} : vector<16x128xf32>, vector<128x512xf32>, vector<16x512xf32> -> vector<16x512xf32>
    %4 = vector.extract_strided_slice %3 {offsets = [0, 0], sizes = [16, 256], strides = [1, 1]} : vector<16x512xf32> to vector<16x256xf32>
    %cst_4 = arith.constant 0.000000e+00 : f32
    %5 = vector.broadcast %cst_4 : f32 to vector<16x256xf32>
    %6 = arith.maximumf %4, %5 : vector<16x256xf32>
    %7 = vector.extract_strided_slice %3 {offsets = [0, 256], sizes = [16, 256], strides = [1, 1]} : vector<16x512xf32> to vector<16x256xf32>
    %8 = arith.mulf %6, %7 : vector<16x256xf32>
    %c0_5 = arith.constant 0 : index
    %c0_6 = arith.constant 0 : index
    %9 = vector.load %arg3[%c0_5, %c0_6] : memref<256x128xf32, #tpu.memory_space<vmem>>, vector<256x128xf32>
    %cst_7 = arith.constant dense<0.000000e+00> : vector<16x128xf32>
    %10 = tpu.matmul %8, %9, %cst_7 {dimension_numbers = #tpu.dot_dimension_numbers<[1], [0], [0], [1], [0, 0, 1, 1], [], []>} : vector<16x256xf32>, vector<256x128xf32>, vector<16x128xf32> -> vector<16x128xf32>
    %11 = arith.addf %10, %0 : vector<16x128xf32>
    %c0_8 = arith.constant 0 : index
    %c0_9 = arith.constant 0 : index
    %12 = vector.load %arg4[%c0_8, %c0_9] : memref<16x128xf32, #tpu.memory_space<vmem>>, vector<16x128xf32>
    tpu.vector_store %arg4[%c0_8, %c0_9], %11 {strides = array<i32>} : memref<16x128xf32, #tpu.memory_space<vmem>>, vector<16x128xf32>,
    return
  }
  func.func @transform_0(%arg0: i32) -> (i32, i32) {
    %c0_i32 = arith.constant 0 : i32
    %c0_i32_0 = arith.constant 0 : i32
    return %arg0, %c0_i32 : i32, i32
  }
  func.func @transform_1(%arg0: i32) -> (i32, i32, i32) {
    %c0_i32 = arith.constant 0 : i32
    %c0_i32_0 = arith.constant 0 : i32
    %c0_i32_1 = arith.constant 0 : i32
    %c0_i32_2 = arith.constant 0 : i32
    return %c0_i32, %c0_i32_0, %c0_i32_1 : i32, i32, i32
  }
  func.func @transform_2(%arg0: i32) -> (i32, i32) {
    %c0_i32 = arith.constant 0 : i32
    %c0_i32_0 = arith.constant 0 : i32
    %c0_i32_1 = arith.constant 0 : i32
    return %c0_i32, %c0_i32_0 : i32, i32
  }
  func.func @transform_3(%arg0: i32) -> (i32, i32) {
    %c0_i32 = arith.constant 0 : i32
    %c0_i32_0 = arith.constant 0 : i32
    return %arg0, %c0_i32 : i32, i32
  }
}

</mosaic_0001>

<llo_original>
// kernel: residual_reglu_forward.1
$region0: #{residual_reglu_forward.1}
  #allocation0 [shape = 'u32[]', space=smem, size = 0x4, offset = 0x4, fixed_abs, tag = 'smem constant byte address 0x4 - core index']
  #allocation1 [shape = 'u32[144,128]{1,0:T(1,128)}', space=vmem, size = 0x12000, scoped, tag = 'internal scratch']
  %s0 = inlined_call_operand.hbm [shape: f32[16,128], index: 0, kind: input, shape index: {}]
  %s1 = inlined_call_operand.hbm [shape: f32[1,128,512], index: 1, kind: input, shape index: {}]
  %s2 = inlined_call_operand.hbm [shape: f32[256,128], index: 2, kind: input, shape index: {}]
  %s3 = inlined_call_operand.hbm [shape: f32[16,128], index: 3, kind: output, shape index: {}]
  %s4 = sld [smem:[#allocation0]]
  $region34: #{residual_reglu_forward.1} parent=0
    _
  %s6 = ssub.s32 1, %s4
  %s7 = scalar_select 0, %s6, %s4
  $region1: #{residual_reglu_forward.1} parent=0
    #allocation2 [shape = 'u8[8192]{0}', space=vmem, size = 0x2000, scoped, tag = 'input window, operand 0, single buffered']
    #allocation3 [shape = 's32[1]{0}', space=sflag, size = 0x4, scoped, tag = 'scoped memory for residual_reglu_forward.1']
    #allocation4 [shape = 's32[1]{0}', space=sflag, size = 0x4, scoped, tag = 'scoped memory for residual_reglu_forward.1']
    #allocation5 [shape = 'u8[262144]{0}', space=vmem, size = 0x40000, scoped, tag = 'input window, operand 1, single buffered']
    #allocation6 [shape = 's32[1]{0}', space=sflag, size = 0x4, scoped, tag = 'scoped memory for residual_reglu_forward.1']
    #allocation7 [shape = 'u8[131072]{0}', space=vmem, size = 0x20000, scoped, tag = 'input window, operand 2, single buffered']
    #allocation8 [shape = 'u8[8192]{0}', space=vmem, size = 0x2000, scoped, tag = 'output window, operand 0, single buffered']
    %8 = vsyncpa [#allocation3], 0
    %9 = vsyncpa [#allocation6], 0
    %10 = vsyncpa [#allocation4], 0
    // Predicated region
    $region2: #{residual_reglu_forward.1} parent=1 // pred_check
      _
    $region3: #{residual_reglu_forward.1} parent=1 // pred_check_branch
      %12 = sbr.rel (0) target = $region5
    $region4: #{residual_reglu_forward.1} parent=1 // pred_region
      %s14 = ssub.s32 256, 256
      %15 = vsyncadd [#allocation3], %s14
      %s16 = sshll.u32 [#allocation2], 4
      %s17 = int_to_ptr.vmem [resolvable:$true] %s16
      %22 = dma.hbm_to_vmem [thread:$0]  %s0, 256, %s17, [#allocation3], 128, 128, 8
    $region5: #{residual_reglu_forward.1} parent=1 // pred_fallthru
      _
    // Predicated region
    $region6: #{residual_reglu_forward.1} parent=1 // pred_check
      _
    $region7: #{residual_reglu_forward.1} parent=1 // pred_check_branch
      %24 = sbr.rel (0) target = $region9
    $region8: #{residual_reglu_forward.1} parent=1 // pred_region
      %s26 = ssub.s32 8192, 8192
      %27 = vsyncadd [#allocation6], %s26
      %s28 = sshll.u32 [#allocation5], 4
      %s29 = int_to_ptr.vmem [resolvable:$true] %s28
      %34 = dma.hbm_to_vmem [thread:$0]  %s1, 8192, %s29, [#allocation6], 512, 512, 32
    $region9: #{residual_reglu_forward.1} parent=1 // pred_fallthru
      _
    // Predicated region
    $region10: #{residual_reglu_forward.1} parent=1 // pred_check
      _
    $region11: #{residual_reglu_forward.1} parent=1 // pred_check_branch
      %36 = sbr.rel (0) target = $region13
    $region12: #{residual_reglu_forward.1} parent=1 // pred_region
      %s38 = ssub.s32 4096, 4096
      %39 = vsyncadd [#allocation6], %s38
      %s40 = sshll.u32 [#allocation7], 4
      %s41 = int_to_ptr.vmem [resolvable:$true] %s40
      %46 = dma.hbm_to_vmem [thread:$0]  %s2, 4096, %s41, [#allocation6], 128, 128, 8
    $region13: #{residual_reglu_forward.1} parent=1 // pred_fallthru
      _
    // Predicated region
    $region14: #{residual_reglu_forward.1} parent=1 // pred_check
      _
    $region15: #{residual_reglu_forward.1} parent=1 // pred_check_branch
      %48 = sbr.rel (0) target = $region17
    $region16: #{residual_reglu_forward.1} parent=1 // pred_region
      %49 = dma.done [#allocation3], 256
    $region17: #{residual_reglu_forward.1} parent=1 // pred_fallthru
      _
    // Predicated region
    $region18: #{residual_reglu_forward.1} parent=1 // pred_check
      _
    $region19: #{residual_reglu_forward.1} parent=1 // pred_check_branch
      %51 = sbr.rel (0) target = $region21
    $region20: #{residual_reglu_forward.1} parent=1 // pred_region
      %52 = dma.done [#allocation6], 8192
    $region21: #{residual_reglu_forward.1} parent=1 // pred_fallthru
      _
    // Predicated region
    $region22: #{residual_reglu_forward.1} parent=1 // pred_check
      _
    $region23: #{residual_reglu_forward.1} parent=1 // pred_check_branch
      %54 = sbr.rel (0) target = $region25
    $region24: #{residual_reglu_forward.1} parent=1 // pred_region
      %55 = dma.done [#allocation6], 4096
    $region25: #{residual_reglu_forward.1} parent=1 // pred_fallthru
      _
    %v56 = vld [vmem:[#allocation2] sm:$0xff]
    %v57 = vld [vmem:[#allocation2 + $0x8] sm:$0xff]
    %v58 = vld [vmem:[#allocation5] sm:$0xff]
    %v59 = vld [vmem:[#allocation5 + $0x8] sm:$0xff]
    %v60 = vld [vmem:[#allocation5 + $0x10] sm:$0xff]
    %v61 = vld [vmem:[#allocation5 + $0x18] sm:$0xff]
    %v62 = vld [vmem:[#allocation5 + $0x20] sm:$0xff]
    %v63 = vld [vmem:[#allocation5 + $0x28] sm:$0xff]
    %v64 = vld [vmem:[#allocation5 + $0x30] sm:$0xff]
    %v65 = vld [vmem:[#allocation5 + $0x38] sm:$0xff]
    %v66 = vld [vmem:[#allocation5 + $0x40] sm:$0xff]
    %v67 = vld [vmem:[#allocation5 + $0x48] sm:$0xff]
    %v68 = vld [vmem:[#allocation5 + $0x50] sm:$0xff]
    %v69 = vld [vmem:[#allocation5 + $0x58] sm:$0xff]
    %v70 = vld [vmem:[#allocation5 + $0x60] sm:$0xff]
    %v71 = vld [vmem:[#allocation5 + $0x68] sm:$0xff]
    %v72 = vld [vmem:[#allocation5 + $0x70] sm:$0xff]
    %v73 = vld [vmem:[#allocation5 + $0x78] sm:$0xff]
    %v74 = vld [vmem:[#allocation5 + $0x80] sm:$0xff]
    %v75 = vld [vmem:[#allocation5 + $0x88] sm:$0xff]
    %v76 = vld [vmem:[#allocation5 + $0x90] sm:$0xff]
    %v77 = vld [vmem:[#allocation5 + $0x98] sm:$0xff]
    %v78 = vld [vmem:[#allocation5 + $0xa0] sm:$0xff]
    %v79 = vld [vmem:[#allocation5 + $0xa8] sm:$0xff]
    %v80 = vld [vmem:[#allocation5 + $0xb0] sm:$0xff]
    %v81 = vld [vmem:[#allocation5 + $0xb8] sm:$0xff]
    %v82 = vld [vmem:[#allocation5 + $0xc0] sm:$0xff]
    %v83 = vld [vmem:[#allocation5 + $0xc8] sm:$0xff]
    %v84 = vld [vmem:[#allocation5 + $0xd0] sm:$0xff]
    %v85 = vld [vmem:[#allocation5 + $0xd8] sm:$0xff]
    %v86 = vld [vmem:[#allocation5 + $0xe0] sm:$0xff]
    %v87 = vld [vmem:[#allocation5 + $0xe8] sm:$0xff]
    %v88 = vld [vmem:[#allocation5 + $0xf0] sm:$0xff]
    %v89 = vld [vmem:[#allocation5 + $0xf8] sm:$0xff]
    %v90 = vld [vmem:[#allocation5 + $0x100] sm:$0xff]
    %v91 = vld [vmem:[#allocation5 + $0x108] sm:$0xff]
    %v92 = vld [vmem:[#allocation5 + $0x110] sm:$0xff]
    %v93 = vld [vmem:[#allocation5 + $0x118] sm:$0xff]
    %v94 = vld [vmem:[#allocation5 + $0x120] sm:$0xff]
    %v95 = vld [vmem:[#allocation5 + $0x128] sm:$0xff]
    %v96 = vld [vmem:[#allocation5 + $0x130] sm:$0xff]
    %v97 = vld [vmem:[#allocation5 + $0x138] sm:$0xff]
    %v98 = vld [vmem:[#allocation5 + $0x140] sm:$0xff]
    %v99 = vld [vmem:[#allocation5 + $0x148] sm:$0xff]
    %v100 = vld [vmem:[#allocation5 + $0x150] sm:$0xff]
    %v101 = vld [vmem:[#allocation5 + $0x158] sm:$0xff]
    %v102 = vld [vmem:[#allocation5 + $0x160] sm:$0xff]
    %v103 = vld [vmem:[#allocation5 + $0x168] sm:$0xff]
    %v104 = vld [vmem:[#allocation5 + $0x170] sm:$0xff]
    %v105 = vld [vmem:[#allocation5 + $0x178] sm:$0xff]
    %v106 = vld [vmem:[#allocation5 + $0x180] sm:$0xff]
    %v107 = vld [vmem:[#allocation5 + $0x188] sm:$0xff]
    %v108 = vld [vmem:[#allocation5 + $0x190] sm:$0xff]
    %v109 = vld [vmem:[#allocation5 + $0x198] sm:$0xff]
    %v110 = vld [vmem:[#allocation5 + $0x1a0] sm:$0xff]
    %v111 = vld [vmem:[#allocation5 + $0x1a8] sm:$0xff]
    %v112 = vld [vmem:[#allocation5 + $0x1b0] sm:$0xff]
    %v113 = vld [vmem:[#allocation5 + $0x1b8] sm:$0xff]
    %v114 = vld [vmem:[#allocation5 + $0x1c0] sm:$0xff]
    %v115 = vld [vmem:[#allocation5 + $0x1c8] sm:$0xff]
    %v116 = vld [vmem:[#allocation5 + $0x1d0] sm:$0xff]
    %v117 = vld [vmem:[#allocation5 + $0x1d8] sm:$0xff]
    %v118 = vld [vmem:[#allocation5 + $0x1e0] sm:$0xff]
    %v119 = vld [vmem:[#allocation5 + $0x1e8] sm:$0xff]
    %v120 = vld [vmem:[#allocation5 + $0x1f0] sm:$0xff]
    %v121 = vld [vmem:[#allocation5 + $0x1f8] sm:$0xff]
    %122 = vmatprep.subr.mxu0 %v59
    %123 = vmatpush1.msra.mxu0 %v58
    %124 = vmatprep.subr.mxu0 %v63
    %125 = vmatpush1.msra.mxu0 %v62
    %126 = vmatprep.subr.mxu0 %v67
    %127 = vmatpush1.msra.mxu0 %v66
    %128 = vmatprep.subr.mxu0 %v71
    %129 = vmatpush1.msra.mxu0 %v70
    %130 = vmatprep.subr.mxu0 %v75
    %131 = vmatpush1.msra.mxu0 %v74
    %132 = vmatprep.subr.mxu0 %v79
    %133 = vmatpush1.msra.mxu0 %v78
    %134 = vmatprep.subr.mxu0 %v83
    %135 = vmatpush1.msra.mxu0 %v82
    %136 = vmatprep.subr.mxu0 %v87
    %137 = vmatpush1.msra.mxu0 %v86
    %138 = vmatprep.subr.mxu0 %v91
    %139 = vmatpush1.msra.mxu0 %v90
    %140 = vmatprep.subr.mxu0 %v95
    %141 = vmatpush1.msra.mxu0 %v94
    %142 = vmatprep.subr.mxu0 %v99
    %143 = vmatpush1.msra.mxu0 %v98
    %144 = vmatprep.subr.mxu0 %v103
    %145 = vmatpush1.msra.mxu0 %v102
    %146 = vmatprep.subr.mxu0 %v107
    %147 = vmatpush1.msra.mxu0 %v106
    %148 = vmatprep.subr.mxu0 %v111
    %149 = vmatpush1.msra.mxu0 %v110
    %150 = vmatprep.subr.mxu0 %v115
    %151 = vmatpush1.msra.mxu0 %v114
    %152 = vmatprep.subr.mxu0 %v119
    %153 = vmatpush1.msra.mxu0 %v118
    %154 = vmatprep.subr.mxu0 0.0
    %155 = vmatpush1.msra.mxu0 0.0
    %156 = vmatprep.subr.mxu0 0.0
    %157 = vmatpush1.msra.mxu0 0.0
    %158 = vmatprep.subr.mxu0 0.0
    %159 = vmatpush1.msra.mxu0 0.0
    %160 = vmatprep.subr.mxu0 0.0
    %161 = vmatpush1.msra.mxu0 0.0
    %162 = vmatprep.subr.mxu0 0.0
    %163 = vmatpush1.msra.mxu0 0.0
    %164 = vmatprep.subr.mxu0 0.0
    %165 = vmatpush1.msra.mxu0 0.0
    %166 = vmatprep.subr.mxu0 0.0
    %167 = vmatpush1.msra.mxu0 0.0
    %168 = vmatprep.subr.mxu0 0.0
    %169 = vmatpush1.msra.mxu0 0.0
    %170 = vmatprep.subr.mxu0 0.0
    %171 = vmatpush1.msra.mxu0 0.0
    %172 = vmatprep.subr.mxu0 0.0
    %173 = vmatpush1.msra.mxu0 0.0
    %174 = vmatprep.subr.mxu0 0.0
    %175 = vmatpush1.msra.mxu0 0.0
    %176 = vmatprep.subr.mxu0 0.0
    %177 = vmatpush1.msra.mxu0 0.0
    %178 = vmatprep.subr.mxu0 0.0
    %179 = vmatpush1.msra.mxu0 0.0
    %180 = vmatprep.subr.mxu0 0.0
    %181 = vmatpush1.msra.mxu0 0.0
    %182 = vmatprep.subr.mxu0 0.0
    %183 = vmatpush1.msra.mxu0 0.0
    %184 = vmatprep.subr.mxu0 0.0
    %185 = vmatpush1.msra.mxu0 0.0
    %186 = vmatprep.mubr.f32.mxu0 0.0
    %187 = vmatmul.mubr.f32.gmra.mrb[0].mxu0 %v56
    %v188 = vpop.f32.mrb[0].mxu0
    %v189 = vadd.f32 0.0, %v188
    %v190 = vpop.f32.mrb[0].mxu0
    %v191 = vadd.f32 0.0, %v190
    %192 = vmatprep.mubr.f32.mxu0 0.0
    %193 = vmatmul.mubr.f32.gmra.mrb[0].mxu0 %v57
    %v194 = vpop.f32.mrb[0].mxu0
    %v195 = vadd.f32 0.0, %v194
    %v196 = vpop.f32.mrb[0].mxu0
    %v197 = vadd.f32 0.0, %v196
    %198 = vdwg.mxu0
    %199 = vmatprep.subr.mxu0 %v61
    %200 = vmatpush1.msra.mxu0 %v60
    %201 = vmatprep.subr.mxu0 %v65
    %202 = vmatpush1.msra.mxu0 %v64
    %203 = vmatprep.subr.mxu0 %v69
    %204 = vmatpush1.msra.mxu0 %v68
    %205 = vmatprep.subr.mxu0 %v73
    %206 = vmatpush1.msra.mxu0 %v72
    %207 = vmatprep.subr.mxu0 %v77
    %208 = vmatpush1.msra.mxu0 %v76
    %209 = vmatprep.subr.mxu0 %v81
    %210 = vmatpush1.msra.mxu0 %v80
    %211 = vmatprep.subr.mxu0 %v85
    %212 = vmatpush1.msra.mxu0 %v84
    %213 = vmatprep.subr.mxu0 %v89
    %214 = vmatpush1.msra.mxu0 %v88
    %215 = vmatprep.subr.mxu0 %v93
    %216 = vmatpush1.msra.mxu0 %v92
    %217 = vmatprep.subr.mxu0 %v97
    %218 = vmatpush1.msra.mxu0 %v96
    %219 = vmatprep.subr.mxu0 %v101
    %220 = vmatpush1.msra.mxu0 %v100
    %221 = vmatprep.subr.mxu0 %v105
    %222 = vmatpush1.msra.mxu0 %v104
    %223 = vmatprep.subr.mxu0 %v109
    %224 = vmatpush1.msra.mxu0 %v108
    %225 = vmatprep.subr.mxu0 %v113
    %226 = vmatpush1.msra.mxu0 %v112
    %227 = vmatprep.subr.mxu0 %v117
    %228 = vmatpush1.msra.mxu0 %v116
    %229 = vmatprep.subr.mxu0 %v121
    %230 = vmatpush1.msra.mxu0 %v120
    %231 = vmatprep.subr.mxu0 0.0
    %232 = vmatpush1.msra.mxu0 0.0
    %233 = vmatprep.subr.mxu0 0.0
    %234 = vmatpush1.msra.mxu0 0.0
    %235 = vmatprep.subr.mxu0 0.0
    %236 = vmatpush1.msra.mxu0 0.0
    %237 = vmatprep.subr.mxu0 0.0
    %238 = vmatpush1.msra.mxu0 0.0
    %239 = vmatprep.subr.mxu0 0.0
    %240 = vmatpush1.msra.mxu0 0.0
    %241 = vmatprep.subr.mxu0 0.0
    %242 = vmatpush1.msra.mxu0 0.0
    %243 = vmatprep.subr.mxu0 0.0
    %244 = vmatpush1.msra.mxu0 0.0
    %245 = vmatprep.subr.mxu0 0.0
    %246 = vmatpush1.msra.mxu0 0.0
    %247 = vmatprep.subr.mxu0 0.0
    %248 = vmatpush1.msra.mxu0 0.0
    %249 = vmatprep.subr.mxu0 0.0
    %250 = vmatpush1.msra.mxu0 0.0
    %251 = vmatprep.subr.mxu0 0.0
    %252 = vmatpush1.msra.mxu0 0.0
    %253 = vmatprep.subr.mxu0 0.0
    %254 = vmatpush1.msra.mxu0 0.0
    %255 = vmatprep.subr.mxu0 0.0
    %256 = vmatpush1.msra.mxu0 0.0
    %257 = vmatprep.subr.mxu0 0.0
    %258 = vmatpush1.msra.mxu0 0.0
    %259 = vmatprep.subr.mxu0 0.0
    %260 = vmatpush1.msra.mxu0 0.0
    %261 = vmatprep.subr.mxu0 0.0
    %262 = vmatpush1.msra.mxu0 0.0
    %263 = vmatprep.mubr.f32.mxu0 0.0
    %264 = vmatmul.mubr.f32.gmra.mrb[0].mxu0 %v56
    %v265 = vpop.f32.mrb[0].mxu0
    %v266 = vadd.f32 0.0, %v265
    %v267 = vpop.f32.mrb[0].mxu0
    %v268 = vadd.f32 0.0, %v267
    %269 = vmatprep.mubr.f32.mxu0 0.0
    %270 = vmatmul.mubr.f32.gmra.mrb[0].mxu0 %v57
    %v271 = vpop.f32.mrb[0].mxu0
    %v272 = vadd.f32 0.0, %v271
    %v273 = vpop.f32.mrb[0].mxu0
    %v274 = vadd.f32 0.0, %v273
    %275 = vdwg.mxu0
    %v276 = vmax.f32 %v189, 0.0
    %v277 = vmax.f32 %v191, 0.0
    %v278 = vmax.f32 %v195, 0.0
    %v279 = vmax.f32 %v197, 0.0
    %v280 = vmul.f32 %v276, %v266
    %v281 = vmul.f32 %v277, %v268
    %v282 = vmul.f32 %v278, %v272
    %v283 = vmul.f32 %v279, %v274
    %v284 = vld [vmem:[#allocation7] sm:$0xff]
    %v285 = vld [vmem:[#allocation7 + $0x8] sm:$0xff]
    %v286 = vld [vmem:[#allocation7 + $0x10] sm:$0xff]
    %v287 = vld [vmem:[#allocation7 + $0x18] sm:$0xff]
    %v288 = vld [vmem:[#allocation7 + $0x20] sm:$0xff]
    %v289 = vld [vmem:[#allocation7 + $0x28] sm:$0xff]
    %v290 = vld [vmem:[#allocation7 + $0x30] sm:$0xff]
    %v291 = vld [vmem:[#allocation7 + $0x38] sm:$0xff]
    %v292 = vld [vmem:[#allocation7 + $0x40] sm:$0xff]
    %v293 = vld [vmem:[#allocation7 + $0x48] sm:$0xff]
    %v294 = vld [vmem:[#allocation7 + $0x50] sm:$0xff]
    %v295 = vld [vmem:[#allocation7 + $0x58] sm:$0xff]
    %v296 = vld [vmem:[#allocation7 + $0x60] sm:$0xff]
    %v297 = vld [vmem:[#allocation7 + $0x68] sm:$0xff]
    %v298 = vld [vmem:[#allocation7 + $0x70] sm:$0xff]
    %v299 = vld [vmem:[#allocation7 + $0x78] sm:$0xff]
    %v300 = vld [vmem:[#allocation7 + $0x80] sm:$0xff]
    %v301 = vld [vmem:[#allocation7 + $0x88] sm:$0xff]
    %v302 = vld [vmem:[#allocation7 + $0x90] sm:$0xff]
    %v303 = vld [vmem:[#allocation7 + $0x98] sm:$0xff]
    %v304 = vld [vmem:[#allocation7 + $0xa0] sm:$0xff]
    %v305 = vld [vmem:[#allocation7 + $0xa8] sm:$0xff]
    %v306 = vld [vmem:[#allocation7 + $0xb0] sm:$0xff]
    %v307 = vld [vmem:[#allocation7 + $0xb8] sm:$0xff]
    %v308 = vld [vmem:[#allocation7 + $0xc0] sm:$0xff]
    %v309 = vld [vmem:[#allocation7 + $0xc8] sm:$0xff]
    %v310 = vld [vmem:[#allocation7 + $0xd0] sm:$0xff]
    %v311 = vld [vmem:[#allocation7 + $0xd8] sm:$0xff]
    %v312 = vld [vmem:[#allocation7 + $0xe0] sm:$0xff]
    %v313 = vld [vmem:[#allocation7 + $0xe8] sm:$0xff]
    %v314 = vld [vmem:[#allocation7 + $0xf0] sm:$0xff]
    %v315 = vld [vmem:[#allocation7 + $0xf8] sm:$0xff]
    %316 = vmatprep.subr.mxu0 0.0
    %317 = vmatpush1.msra.mxu0 %v284
    %318 = vmatprep.subr.mxu0 0.0
    %319 = vmatpush1.msra.mxu0 %v285
    %320 = vmatprep.subr.mxu0 0.0
    %321 = vmatpush1.msra.mxu0 %v286
    %322 = vmatprep.subr.mxu0 0.0
    %323 = vmatpush1.msra.mxu0 %v287
    %324 = vmatprep.subr.mxu0 0.0
    %325 = vmatpush1.msra.mxu0 %v288
    %326 = vmatprep.subr.mxu0 0.0
    %327 = vmatpush1.msra.mxu0 %v289
    %328 = vmatprep.subr.mxu0 0.0
    %329 = vmatpush1.msra.mxu0 %v290
    %330 = vmatprep.subr.mxu0 0.0
    %331 = vmatpush1.msra.mxu0 %v291
    %332 = vmatprep.subr.mxu0 0.0
    %333 = vmatpush1.msra.mxu0 %v292
    %334 = vmatprep.subr.mxu0 0.0
    %335 = vmatpush1.msra.mxu0 %v293
    %336 = vmatprep.subr.mxu0 0.0
    %337 = vmatpush1.msra.mxu0 %v294
    %338 = vmatprep.subr.mxu0 0.0
    %339 = vmatpush1.msra.mxu0 %v295
    %340 = vmatprep.subr.mxu0 0.0
    %341 = vmatpush1.msra.mxu0 %v296
    %342 = vmatprep.subr.mxu0 0.0
    %343 = vmatpush1.msra.mxu0 %v297
    %344 = vmatprep.subr.mxu0 0.0
    %345 = vmatpush1.msra.mxu0 %v298
    %346 = vmatprep.subr.mxu0 0.0
    %347 = vmatpush1.msra.mxu0 %v299
    %348 = vmatprep.subr.mxu0 0.0
    %349 = vmatpush1.msra.mxu0 %v300
    %350 = vmatprep.subr.mxu0 0.0
    %351 = vmatpush1.msra.mxu0 %v301
    %352 = vmatprep.subr.mxu0 0.0
    %353 = vmatpush1.msra.mxu0 %v302
    %354 = vmatprep.subr.mxu0 0.0
    %355 = vmatpush1.msra.mxu0 %v303
    %356 = vmatprep.subr.mxu0 0.0
    %357 = vmatpush1.msra.mxu0 %v304
    %358 = vmatprep.subr.mxu0 0.0
    %359 = vmatpush1.msra.mxu0 %v305
    %360 = vmatprep.subr.mxu0 0.0
    %361 = vmatpush1.msra.mxu0 %v306
    %362 = vmatprep.subr.mxu0 0.0
    %363 = vmatpush1.msra.mxu0 %v307
    %364 = vmatprep.subr.mxu0 0.0
    %365 = vmatpush1.msra.mxu0 %v308
    %366 = vmatprep.subr.mxu0 0.0
    %367 = vmatpush1.msra.mxu0 %v309
    %368 = vmatprep.subr.mxu0 0.0
    %369 = vmatpush1.msra.mxu0 %v310
    %370 = vmatprep.subr.mxu0 0.0
    %371 = vmatpush1.msra.mxu0 %v311
    %372 = vmatprep.subr.mxu0 0.0
    %373 = vmatpush1.msra.mxu0 %v312
    %374 = vmatprep.subr.mxu0 0.0
    %375 = vmatpush1.msra.mxu0 %v313
    %376 = vmatprep.subr.mxu0 0.0
    %377 = vmatpush1.msra.mxu0 %v314
    %378 = vmatprep.subr.mxu0 0.0
    %379 = vmatpush1.msra.mxu0 %v315
    %380 = vmatprep.mubr.f32.mxu0 %v281
    %381 = vmatmul.mubr.f32.gmra.mrb[0].mxu0 %v280
    %v382 = vpop.f32.mrb[0].mxu0
    %v383 = vadd.f32 %v56, %v382
    %v384 = vpop.f32.mrb[0].mxu0
    %385 = vmatprep.mubr.f32.mxu0 %v283
    %386 = vmatmul.mubr.f32.gmra.mrb[0].mxu0 %v282
    %v387 = vpop.f32.mrb[0].mxu0
    %v388 = vadd.f32 %v57, %v387
    %v389 = vpop.f32.mrb[0].mxu0
    %390 = vdwg.mxu0
    %391 = vst [vmem:[#allocation8] sm:$0xff] %v383
    %392 = vst [vmem:[#allocation8 + $0x8] sm:$0xff] %v388
    // Predicated region
    $region26: #{residual_reglu_forward.1} parent=1 // pred_check
      _
    $region27: #{residual_reglu_forward.1} parent=1 // pred_check_branch
      %394 = sbr.rel (0) target = $region29
    $region28: #{residual_reglu_forward.1} parent=1 // pred_region
      %s396 = ssub.s32 256, 256
      %397 = vsyncadd [#allocation4], %s396
      %s398 = sshll.u32 [#allocation8], 4
      %s399 = int_to_ptr.vmem [resolvable:$true] %s398
      %404 = dma.vmem_to_hbm [thread:$0]  %s399, 256, %s3, [#allocation4], 128, 128, 8
    $region29: #{residual_reglu_forward.1} parent=1 // pred_fallthru
      _
    // Predicated region
    $region30: #{residual_reglu_forward.1} parent=1 // pred_check
      _
    $region31: #{residual_reglu_forward.1} parent=1 // pred_check_branch
      %406 = sbr.rel (0) target = $region33
    $region32: #{residual_reglu_forward.1} parent=1 // pred_region
      %407 = dma.done [#allocation4], 256
    $region33: #{residual_reglu_forward.1} parent=1 // pred_fallthru
      _
    %408 = vsyncpa [#allocation3], 1
    %409 = vsyncpa [#allocation6], 1
    %410 = vsyncpa [#allocation4], 1

</llo_original>
